<compile_context>
chip_gen: v7x
topology: tpu7x:2x2x1
jax: 0.10.0
libtpu: 0.0.40
codegen_flags: <defaults>
</compile_context>

<pallas_src>
import functools

import jax
import jax.numpy as jnp
import numpy as np
from jax.experimental import pallas as pl
from jax.experimental.pallas import tpu as pltpu


# ----------------------------------------------------------------------------
# Generation-aware tiling parameters
# ----------------------------------------------------------------------------
def _tpu_generation_params():
    """Best-effort per-generation tiling / VMEM budget (safe defaults otherwise)."""
    kind = ""
    try:
        kind = jax.devices()[0].device_kind.lower()
    except Exception:
        pass
    if "v7" in kind or "7x" in kind:
        # 2 TensorCores share the 'parallel' axis; 64 MiB physical VMEM.
        return {"cores": 2, "target_block_bytes": 3 << 20, "vmem_cap": 48 << 20}
    if "v6" in kind:
        # 1 TensorCore, 128 MiB physical VMEM -> big blocks, no 2-step cap.
        return {"cores": 1, "target_block_bytes": 6 << 20, "vmem_cap": 100 << 20}
    if "v5 lite" in kind or "v5e" in kind:
        # 1 TensorCore; scoped VMEM default is only 16 MiB -> raise explicitly.
        return {"cores": 1, "target_block_bytes": 6 << 20, "vmem_cap": 100 << 20}
    if "v5" in kind or "v4" in kind:
        # Megacore parts: 2 TensorCores.
        return {"cores": 2, "target_block_bytes": 6 << 20, "vmem_cap": 100 << 20}
    # Unknown device: assume the tightest budget (v7x-like).
    return {"cores": 2, "target_block_bytes": 3 << 20, "vmem_cap": 48 << 20}


def _choose_class_tile(n_cls, row_bytes, target_block_bytes, cores):
    """Classes per grid step.

    Targets `target_block_bytes` output blocks; keeps >= `cores` grid steps on
    multi-TensorCore parts so the 'parallel' axis can shard; the class dim of
    the block is a multiple of 8 (sublane aligned) or equals n_cls, prefers
    divisors of n_cls (no ragged last block) and an even step count per core.
    """
    tile = max(1, target_block_bytes // max(1, row_bytes))
    if cores > 1 and n_cls > cores:
        tile = min(tile, max(1, n_cls // cores))
    if tile >= n_cls or n_cls <= 8:
        return n_cls
    tile = max(8, (tile // 8) * 8)
    divisors = [t for t in range(tile, 7, -8) if n_cls % t == 0]
    if cores > 1:
        for t in divisors:
            if (n_cls // t) % cores == 0:
                return t
    return divisors[0] if divisors else tile


def _largest_divisor_at_most(n, cap):
    cap = max(1, min(cap, n))
    for t in range(cap, 0, -1):
        if n % t == 0:
            return t
    return 1


# ----------------------------------------------------------------------------
# Kernel 1: full prompt assembly via lane-aligned flat slice stores
# ----------------------------------------------------------------------------
def _make_flat_prompt_kernel(ctx_dim, n_ctx, ctx_is_csc, out_dtype):
    d = ctx_dim
    ctx_w = n_ctx * ctx_dim

    def kernel(prefix_ref, ctx_ref, suffix_ref, out_ref):
        c_tile = out_ref.shape[0]
        # Three direct slice stores at flat offsets 0, D, (1+n_ctx)*D.
        # For CLIP's D=512/768 these are multiples of 128 lanes -> unmasked
        # whole-vreg vst, no concat temporary, no sublane retiling.
        out_ref[:, 0:d] = prefix_ref[...]
        if ctx_is_csc:
            # float32 learnable ctx cast on the VPU (free in a mem-bound kernel).
            out_ref[:, d:d + ctx_w] = ctx_ref[...].astype(out_dtype)
        else:
            out_ref[:, d:d + ctx_w] = jnp.broadcast_to(
                ctx_ref[...].astype(out_dtype), (c_tile, ctx_w))
        out_ref[:, d + ctx_w:] = suffix_ref[...]

    return kernel


@jax.jit
def prompt_learner_forward(token_prefix, ctx, token_suffix):
    """prompts = cat([prefix, ctx, suffix], dim=1)  (class_token_position='end').

    token_prefix: (n_cls, 1, D)
    ctx:          (n_ctx, D) generic, or (n_cls, n_ctx, D) class-specific (f32 ok)
    token_suffix: (n_cls, n_sfx, D)
    returns prompts: (n_cls, 1 + n_ctx + n_sfx, D) in the embedding dtype.
    """
    n_cls, one, ctx_dim = token_prefix.shape
    assert one == 1
    if ctx.ndim == 2:
        n_ctx, d2 = ctx.shape
        ctx_is_csc = False
    else:
        nc2, n_ctx, d2 = ctx.shape
        assert nc2 == n_cls
        ctx_is_csc = True
    assert d2 == ctx_dim
    n_cls2, n_sfx, d3 = token_suffix.shape
    assert n_cls2 == n_cls and d3 == ctx_dim
    n_tkn = 1 + n_ctx + n_sfx

    out_dtype = token_prefix.dtype
    assert token_suffix.dtype == out_dtype

    gen = _tpu_generation_params()
    out_bytes = jnp.dtype(out_dtype).itemsize
    ctx_bytes = jnp.dtype(ctx.dtype).itemsize
    row_bytes = n_tkn * ctx_dim * out_bytes
    c_tile = _choose_class_tile(n_cls, row_bytes,
                                gen["target_block_bytes"], gen["cores"])
    grid = (pl.cdiv(n_cls, c_tile),)

    # Flatten tokens*D into the last (lane) dim: free, row-major contiguous.
    prefix2d = token_prefix.reshape(n_cls, ctx_dim)
    suffix2d = token_suffix.reshape(n_cls, n_sfx * ctx_dim)
    if ctx_is_csc:
        ctx2d = ctx.reshape(n_cls, n_ctx * ctx_dim)
        ctx_spec = pl.BlockSpec((c_tile, n_ctx * ctx_dim), lambda i: (i, 0))
        ctx_blk_rows = c_tile
    else:
        ctx2d = ctx.reshape(1, n_ctx * ctx_dim)
        # Same (full) block every step -> not re-DMAed between iterations.
        ctx_spec = pl.BlockSpec((1, n_ctx * ctx_dim), lambda i: (0, 0))
        ctx_blk_rows = 1

    # Double-buffered VMEM footprint (+ headroom), clamped to the generation cap.
    blk_bytes = (c_tile * ctx_dim * out_bytes
                 + ctx_blk_rows * n_ctx * ctx_dim * ctx_bytes
                 + c_tile * n_sfx * ctx_dim * out_bytes
                 + c_tile * n_tkn * ctx_dim * out_bytes)
    vmem_limit = int(min(gen["vmem_cap"], max(32 << 20, 2 * blk_bytes + (4 << 20))))

    kernel = _make_flat_prompt_kernel(ctx_dim, n_ctx, ctx_is_csc, out_dtype)

    out2d = pl.pallas_call(
        kernel,
        out_shape=jax.ShapeDtypeStruct((n_cls, n_tkn * ctx_dim), out_dtype),
        grid=grid,
        in_specs=[
            pl.BlockSpec((c_tile, ctx_dim), lambda i: (i, 0)),           # SOS
            ctx_spec,                                                     # context
            pl.BlockSpec((c_tile, n_sfx * ctx_dim), lambda i: (i, 0)),    # name+EOS+pad
        ],
        out_specs=pl.BlockSpec((c_tile, n_tkn * ctx_dim), lambda i: (i, 0)),
        compiler_params=pltpu.CompilerParams(
            dimension_semantics=("parallel",),
            vmem_limit_bytes=vmem_limit,
        ),
    )(prefix2d, ctx2d, suffix2d)
    return out2d.reshape(n_cls, n_tkn, ctx_dim)


# ----------------------------------------------------------------------------
# Kernel 2: aliased prompts buffer, only the ctx token rows are (re)written
# ----------------------------------------------------------------------------
def _make_ctx_writeback_kernel(n_ctx, ctx_is_csc, out_dtype):
    def kernel(base_hbm_ref, ctx_ref, out_hbm_ref, ctx_vmem, sem):
        del base_hbm_ref  # aliased into out_hbm_ref; prefix/suffix stay untouched
        i = pl.program_id(0)
        c_tile = ctx_vmem.shape[0]
        if ctx_is_csc:
            ctx_vmem[...] = ctx_ref[...].astype(out_dtype)
        else:
            ctx_vmem[...] = jnp.broadcast_to(
                ctx_ref[...][None, :, :].astype(out_dtype), ctx_vmem.shape)
        # DMA engines handle the odd token offset (1) natively: write only the
        # ctx rows [1, 1+n_ctx) of this class tile, nothing else touches HBM.
        cp = pltpu.make_async_copy(
            ctx_vmem,
            out_hbm_ref.at[pl.ds(i * c_tile, c_tile), pl.ds(1, n_ctx), :],
            sem)
        cp.start()
        cp.wait()

    return kernel


@functools.partial(jax.jit, donate_argnums=(0,))
def prompt_learner_forward_cached(prompts_base, ctx):
    """Fast path exploiting that token_prefix / token_suffix are constant buffers.

    `prompts_base` is an (n_cls, n_tkn, D) buffer whose SOS (token 0) and
    suffix (tokens >= 1+n_ctx) rows are already filled; each forward only the
    ctx token rows [1, 1+n_ctx) are rewritten.  The buffer is aliased to the
    output (input_output_aliases + donation) so HBM writes shrink to
    n_cls*n_ctx*D and prefix/suffix are never re-read.  Reuse the returned
    array as `prompts_base` for the next call.
    """
    n_cls, n_tkn, ctx_dim = prompts_base.shape
    out_dtype = prompts_base.dtype
    if ctx.ndim == 2:
        n_ctx, d2 = ctx.shape
        ctx_is_csc = False
    else:
        nc2, n_ctx, d2 = ctx.shape
        assert nc2 == n_cls
        ctx_is_csc = True
    assert d2 == ctx_dim and n_tkn >= 1 + n_ctx

    gen = _tpu_generation_params()
    row_bytes = n_ctx * ctx_dim * jnp.dtype(out_dtype).itemsize
    # Tile must divide n_cls so the manual DMA never writes out of bounds.
    c_tile = _largest_divisor_at_most(
        n_cls, max(1, gen["target_block_bytes"] // max(1, row_bytes)))
    grid = (n_cls // c_tile,)

    if ctx_is_csc:
        ctx_spec = pl.BlockSpec((c_tile, n_ctx, ctx_dim), lambda i: (i, 0, 0))
    else:
        ctx_spec = pl.BlockSpec((n_ctx, ctx_dim), lambda i: (0, 0))

    kernel = _make_ctx_writeback_kernel(n_ctx, ctx_is_csc, out_dtype)

    return pl.pallas_call(
        kernel,
        out_shape=jax.ShapeDtypeStruct((n_cls, n_tkn, ctx_dim), out_dtype),
        grid=grid,
        in_specs=[
            pl.BlockSpec(memory_space=pl.ANY),   # prefilled prompts (aliased to out)
            ctx_spec,                            # learnable context -> VMEM
        ],
        out_specs=pl.BlockSpec(memory_space=pl.ANY),
        scratch_shapes=[
            pltpu.VMEM((c_tile, n_ctx, ctx_dim), out_dtype),
            pltpu.SemaphoreType.DMA,
        ],
        input_output_aliases={0: 0},
        compiler_params=pltpu.CompilerParams(
            dimension_semantics=("arbitrary",),
        ),
    )(prompts_base, ctx)


# ----------------------------------------------------------------------------
# Self-test
# ----------------------------------------------------------------------------
if __name__ == "__main__":
    # Small synthetic configuration consistent with the module's __init__:
    #   n_cls = cfg.initial_increment, n_ctx = cfg.N_CTX,
    #   ctx_dim = clip_model.ln_final.weight.shape[0], seq_len = 77 in real CLIP.
    n_cls = 4
    n_ctx = 4
    ctx_dim = 128          # lane-dense last dim (real CLIP: 512/768)
    seq_len = 16
    n_sfx = seq_len - 1 - n_ctx   # 11
    emb_dtype = jnp.bfloat16

    key = jax.random.PRNGKey(0)
    k_ctx, k_pre, k_suf, k_csc = jax.random.split(key, 4)

    # ctx ~ N(0, 0.02) as in nn.init.normal_(ctx_vectors, std=0.02); kept as a
    # float32 learnable parameter (cast to the embedding dtype inside the kernel).
    ctx = (0.02 * jax.random.normal(k_ctx, (n_ctx, ctx_dim))).astype(jnp.float32)
    token_prefix = jax.random.normal(k_pre, (n_cls, 1, ctx_dim)).astype(emb_dtype)
    token_suffix = jax.random.normal(k_suf, (n_cls, n_sfx, ctx_dim)).astype(emb_dtype)

    # --- generic (shared) context path -------------------------------------
    prompts = jax.block_until_ready(
        prompt_learner_forward(token_prefix, ctx, token_suffix))
    ctx_b = jnp.broadcast_to(ctx.astype(emb_dtype)[None], (n_cls, n_ctx, ctx_dim))
    ref = jnp.concatenate([token_prefix, ctx_b, token_suffix], axis=1)
    np.testing.assert_array_equal(
        np.asarray(prompts, dtype=np.float32), np.asarray(ref, dtype=np.float32))
    assert prompts.shape == (n_cls, seq_len, ctx_dim)

    # --- class-specific-context (CSC) path ----------------------------------
    ctx_csc = (0.02 * jax.random.normal(
        k_csc, (n_cls, n_ctx, ctx_dim))).astype(jnp.float32)
    prompts_csc = jax.block_until_ready(
        prompt_learner_forward(token_prefix, ctx_csc, token_suffix))
    ref_csc = jnp.concatenate(
        [token_prefix, ctx_csc.astype(emb_dtype), token_suffix], axis=1)
    np.testing.assert_array_equal(
        np.asarray(prompts_csc, dtype=np.float32),
        np.asarray(ref_csc, dtype=np.float32))

    # --- cached / aliased fast path (ctx rows only) --------------------------
    base = jnp.concatenate(
        [token_prefix, jnp.zeros((n_cls, n_ctx, ctx_dim), emb_dtype), token_suffix],
        axis=1)
    prompts_cached = jax.block_until_ready(
        prompt_learner_forward_cached(base, ctx))
    np.testing.assert_array_equal(
        np.asarray(prompts_cached, dtype=np.float32),
        np.asarray(ref, dtype=np.float32))

    # Reuse the returned buffer as the next call's base (intended usage) with
    # the class-specific context this time.
    prompts_cached_csc = jax.block_until_ready(
        prompt_learner_forward_cached(prompts_cached, ctx_csc))
    np.testing.assert_array_equal(
        np.asarray(prompts_cached_csc, dtype=np.float32),
        np.asarray(ref_csc, dtype=np.float32))

    print("KERNEL_OK")
</pallas_src>

<mosaic_0001>
module attributes {stable_mosaic.version = 11 : i64} {
  func.func @kernel(%arg0: i32, %arg1: memref<4x128xbf16, #tpu.memory_space<vmem>>, %arg2: memref<1x512xf32, #tpu.memory_space<vmem>>, %arg3: memref<4x1408xbf16, #tpu.memory_space<vmem>>, %arg4: memref<4x2048xbf16, #tpu.memory_space<vmem>>) attributes {dimension_semantics = [#tpu.dimension_semantics<parallel>], iteration_bounds = array<i64: 1>, scalar_prefetch = 0 : i64, scratch_operands = 0 : i64, tpu.core_type = #tpu.core_type<tc>, window_params = [{transform_indices = @transform_0, window_bounds = array<i64: 4, 128>}, {pipeline_mode = #tpu.pipeline_mode<synchronous>, transform_indices = @transform_1, window_bounds = array<i64: 1, 512>}, {transform_indices = @transform_2, window_bounds = array<i64: 4, 1408>}, {transform_indices = @transform_3, window_bounds = array<i64: 4, 2048>}]} {
    %c0 = arith.constant 0 : index
    %c0_0 = arith.constant 0 : index
    %0 = vector.load %arg1[%c0, %c0_0] : memref<4x128xbf16, #tpu.memory_space<vmem>>, vector<4x128xbf16>
    %c0_1 = arith.constant 0 : index
    %c0_2 = arith.constant 0 : index
    %1 = vector.load %arg4[%c0_1, %c0_2] : memref<4x2048xbf16, #tpu.memory_space<vmem>>, vector<4x128xbf16>
    tpu.vector_store %arg4[%c0_1, %c0_2], %0 {strides = array<i32>} : memref<4x2048xbf16, #tpu.memory_space<vmem>>, vector<4x128xbf16>,
    %c0_3 = arith.constant 0 : index
    %c0_4 = arith.constant 0 : index
    %2 = vector.load %arg2[%c0_3, %c0_4] : memref<1x512xf32, #tpu.memory_space<vmem>>, vector<1x512xf32>
    %3 = arith.truncf %2 : vector<1x512xf32> to vector<1x512xbf16>
    %4 = vector.shape_cast %3 : vector<1x512xbf16> to vector<1x512xbf16>
    %5 = vector.broadcast %4 : vector<1x512xbf16> to vector<4x512xbf16>
    %c0_5 = arith.constant 0 : index
    %c128 = arith.constant 128 : index
    %6 = vector.load %arg4[%c0_5, %c128] : memref<4x2048xbf16, #tpu.memory_space<vmem>>, vector<4x512xbf16>
    tpu.vector_store %arg4[%c0_5, %c128], %5 {strides = array<i32>} : memref<4x2048xbf16, #tpu.memory_space<vmem>>, vector<4x512xbf16>,
    %c0_6 = arith.constant 0 : index
    %c0_7 = arith.constant 0 : index
    %7 = vector.load %arg3[%c0_6, %c0_7] : memref<4x1408xbf16, #tpu.memory_space<vmem>>, vector<4x1408xbf16>
    %c0_8 = arith.constant 0 : index
    %c640 = arith.constant 640 : index
    %8 = vector.load %arg4[%c0_8, %c640] : memref<4x2048xbf16, #tpu.memory_space<vmem>>, vector<4x1408xbf16>
    tpu.vector_store %arg4[%c0_8, %c640], %7 {strides = array<i32>} : memref<4x2048xbf16, #tpu.memory_space<vmem>>, vector<4x1408xbf16>,
    return
  }
  func.func @transform_0(%arg0: i32) -> (i32, i32) {
    %c0_i32 = arith.constant 0 : i32
    %c0_i32_0 = arith.constant 0 : i32
    return %arg0, %c0_i32 : i32, i32
  }
  func.func @transform_1(%arg0: i32) -> (i32, i32) {
    %c0_i32 = arith.constant 0 : i32
    %c0_i32_0 = arith.constant 0 : i32
    %c0_i32_1 = arith.constant 0 : i32
    return %c0_i32, %c0_i32_0 : i32, i32
  }
  func.func @transform_2(%arg0: i32) -> (i32, i32) {
    %c0_i32 = arith.constant 0 : i32
    %c0_i32_0 = arith.constant 0 : i32
    return %arg0, %c0_i32 : i32, i32
  }
  func.func @transform_3(%arg0: i32) -> (i32, i32) {
    %c0_i32 = arith.constant 0 : i32
    %c0_i32_0 = arith.constant 0 : i32
    return %arg0, %c0_i32 : i32, i32
  }
}

</mosaic_0001>

<llo_original>
// kernel: prompt_learner_forward.1
$region0: #{prompt_learner_forward.1}
  #allocation0 [shape = 'u32[]', space=smem, size = 0x4, offset = 0x4, fixed_abs, tag = 'smem constant byte address 0x4 - core index']
  #allocation1 [shape = 'u32[144,128]{1,0:T(1,128)}', space=vmem, size = 0x12000, scoped, tag = 'internal scratch']
  %s0 = inlined_call_operand.vmem [shape: bf16[4,128], index: 0, kind: input, shape index: {}]
  %s1 = inlined_call_operand.vmem [shape: f32[1,512], index: 1, kind: input, shape index: {}]
  %s2 = inlined_call_operand.hbm [shape: bf16[4,1408], index: 2, kind: input, shape index: {}]
  %s3 = inlined_call_operand.vmem [shape: bf16[4,2048], index: 3, kind: output, shape index: {}]
  %s4 = sld [smem:[#allocation0]]
  $region26: #{prompt_learner_forward.1} parent=0
    _
  %s6 = ssub.s32 1, %s4
  %s7 = scalar_select 0, %s6, %s4
  $region1: #{prompt_learner_forward.1} parent=0
    #allocation2 [shape = 'u8[11264]{0}', space=vmem, size = 0x2c00, scoped, tag = 'input window, operand 2, single buffered']
    #allocation3 [shape = 's32[1]{0}', space=sflag, size = 0x4, scoped, tag = 'scoped memory for prompt_learner_forward.1']
    %8 = vsyncpa [#allocation3], 0
    // Predicated region
    $region2: #{prompt_learner_forward.1} parent=1 // pred_check
      _
    $region3: #{prompt_learner_forward.1} parent=1 // pred_check_branch
      %10 = sbr.rel (0) target = $region5
    $region4: #{prompt_learner_forward.1} parent=1 // pred_region
      _
    $region5: #{prompt_learner_forward.1} parent=1 // pred_fallthru
      _
    // Predicated region
    $region6: #{prompt_learner_forward.1} parent=1 // pred_check
      _
    $region7: #{prompt_learner_forward.1} parent=1 // pred_check_branch
      %12 = sbr.rel (0) target = $region9
    $region8: #{prompt_learner_forward.1} parent=1 // pred_region
      _
    $region9: #{prompt_learner_forward.1} parent=1 // pred_fallthru
      _
    // Predicated region
    $region10: #{prompt_learner_forward.1} parent=1 // pred_check
      _
    $region11: #{prompt_learner_forward.1} parent=1 // pred_check_branch
      %14 = sbr.rel (0) target = $region13
    $region12: #{prompt_learner_forward.1} parent=1 // pred_region
      %s16 = ssub.s32 352, 352
      %17 = vsyncadd [#allocation3], %s16
      %s19 = sshll.u32 [#allocation2], 4
      %s20 = int_to_ptr.vmem [resolvable:$true] %s19
      %22 = dma.hbm_to_vmem [thread:$0]  %s2, 352, %s20, [#allocation3]
    $region13: #{prompt_learner_forward.1} parent=1 // pred_fallthru
      _
    // Predicated region
    $region14: #{prompt_learner_forward.1} parent=1 // pred_check
      _
    $region15: #{prompt_learner_forward.1} parent=1 // pred_check_branch
      %24 = sbr.rel (0) target = $region17
    $region16: #{prompt_learner_forward.1} parent=1 // pred_region
      %25 = dma.done [#allocation3], 352
    $region17: #{prompt_learner_forward.1} parent=1 // pred_fallthru
      _
    %v26 = vld [vmem:[%s0] sm:$0x3]
    %27 = vst [vmem:[%s3] sm:$0x3] %v26
    %v28 = vld [vmem:[%s1] sm:$0xf]
    %v30 = vlaneseq
    %v31 = vshrl.u32 %v30, 7
    %v32 = vsub.s32 0, %v31
    %v33 = vrot.slane %v28, %v32
    %v34 = vlaneseq
    %v35 = vshrl.u32 %v34, 7
    %v36 = vsub.s32 1, %v35
    %v37 = vrot.slane %v28, %v36
    %v38 = vlaneseq
    %v39 = vshrl.u32 %v38, 7
    %v40 = vsub.s32 2, %v39
    %v41 = vrot.slane %v28, %v40
    %v42 = vlaneseq
    %v43 = vshrl.u32 %v42, 7
    %v44 = vsub.s32 3, %v43
    %v45 = vrot.slane %v28, %v44
    %v50 = vpack.c.bf16 %v33, %v33
    %v51 = vpack.c.bf16 %v37, %v37
    %v52 = vpack.c.bf16 %v41, %v41
    %v53 = vpack.c.bf16 %v45, %v45
    %v55 = vpack.i.b16 %v50, %v50
    %v57 = vlaneseq
    %v58 = vshrl.u32 %v57, 7
    %v59 = vsub.s32 0, %v58
    %v60 = vrot.slane %v55, %v59
    %v62 = vpack.i.b16 %v51, %v51
    %v64 = vlaneseq
    %v65 = vshrl.u32 %v64, 7
    %v66 = vsub.s32 0, %v65
    %v67 = vrot.slane %v62, %v66
    %v69 = vpack.i.b16 %v52, %v52
    %v71 = vlaneseq
    %v72 = vshrl.u32 %v71, 7
    %v73 = vsub.s32 0, %v72
    %v74 = vrot.slane %v69, %v73
    %v76 = vpack.i.b16 %v53, %v53
    %v78 = vlaneseq
    %v79 = vshrl.u32 %v78, 7
    %v80 = vsub.s32 0, %v79
    %v81 = vrot.slane %v76, %v80
    %v86 = vcombine.low %v60, %v67
    %v87 = vcombine.low %v74, %v81
    %v89 = vunpack.c.l.s4 1983009808
    %v90 = vunpack.c.0.s8 %v89
    %v91 = vlaneseq
    %v92 = vshrl.u32 %v91, 7
    %v93 = vsub.s32 %v90, %v92
    %v94 = vrot.slane %v86, %v93
    %v96 = vunpack.c.l.s4 1983009808
    %v97 = vunpack.c.0.s8 %v96
    %v98 = vlaneseq
    %v99 = vshrl.u32 %v98, 7
    %v100 = vsub.s32 %v97, %v99
    %v101 = vrot.slane %v87, %v100
    %v102 = vcombine.low %v94, %v101
    %104 = vst [vmem:[%s3 + $0x2] sm:$0xff] %v102
    %v105 = vld [vmem:[#allocation2] sm:$0xff]
    %v106 = vld [vmem:[#allocation2 + $0x8] sm:$0xff]
    %v107 = vld [vmem:[#allocation2 + $0x10] sm:$0x3f]
    %108 = vst [vmem:[%s3 + $0xa] sm:$0xff] %v105
    %109 = vst [vmem:[%s3 + $0x12] sm:$0xff] %v106
    %110 = vst [vmem:[%s3 + $0x1a] sm:$0x3f] %v107
    // Predicated region
    $region18: #{prompt_learner_forward.1} parent=1 // pred_check
      _
    $region19: #{prompt_learner_forward.1} parent=1 // pred_check_branch
      %112 = sbr.rel (0) target = $region21
    $region20: #{prompt_learner_forward.1} parent=1 // pred_region
      _
    $region21: #{prompt_learner_forward.1} parent=1 // pred_fallthru
      _
    // Predicated region
    $region22: #{prompt_learner_forward.1} parent=1 // pred_check
      _
    $region23: #{prompt_learner_forward.1} parent=1 // pred_check_branch
      %114 = sbr.rel (0) target = $region25
    $region24: #{prompt_learner_forward.1} parent=1 // pred_region
      _
    $region25: #{prompt_learner_forward.1} parent=1 // pred_fallthru
      _
    %115 = vsyncpa [#allocation3], 1

</llo_original>
